<compile_context>
chip_gen: v6e
topology: v6e:2x2x1
jax: 0.10.0
libtpu: 0.0.40
codegen_flags: <defaults>
</compile_context>

<pallas_src>
import jax
import jax.numpy as jnp
from jax.experimental import pallas as pl
from jax.experimental.pallas import tpu as pltpu


def _round_up(x: int, m: int) -> int:
    return (x + m - 1) // m * m


def _cdiv(a: int, b: int) -> int:
    return (a + b - 1) // b


def _mlp_kernel(x_ref, w1_ref, b1_ref, w2_ref, b2_ref, o_ref):
    # bf16 operands on the MXU, f32 accumulation; bias add + ReLU in f32 (VPU).
    x = x_ref[...].astype(w1_ref.dtype)
    h = jnp.dot(x, w1_ref[...], preferred_element_type=jnp.float32)
    h = jnp.maximum(h + b1_ref[...], 0.0)
    logits = jnp.dot(h.astype(w2_ref.dtype), w2_ref[...],
                     preferred_element_type=jnp.float32)
    o_ref[...] = (logits + b2_ref[...]).astype(o_ref.dtype)


def prepare_params(w1, b1, w2, b2):
    """One-time parameter prep (hoisted out of the per-call path):
    weights cast to bf16 MXU operands, biases kept f32 as [1, N] rows."""
    return dict(
        w1=jnp.asarray(w1, jnp.bfloat16),
        b1=jnp.asarray(b1, jnp.float32).reshape(1, -1),
        w2=jnp.asarray(w2, jnp.bfloat16),
        b2=jnp.asarray(b2, jnp.float32).reshape(1, -1),
    )


def _choose_batch_tile(batch: int) -> int:
    TB_MAX = 1024  # large tiles amortize ~0.35us/grid-step overhead; VMEM stays tiny.
    n_tiles = _cdiv(batch, TB_MAX)
    if batch > 256:
        n_tiles = max(n_tiles, 2)  # >=2 steps so v7x's two TCs both get work.
    return _round_up(_cdiv(batch, n_tiles), 16)  # 16: bf16 sublane packing.


def personality_classifier_forward(features, params, *, use_pallas=None):
    """features: [B, input_dim] float; params from prepare_params().
    Returns logits: [B, n_classes] float32."""
    w1, b1, w2, b2 = params["w1"], params["b1"], params["w2"], params["b2"]
    B, input_dim = features.shape
    hidden = w1.shape[1]
    n_classes = w2.shape[1]

    if use_pallas is None:
        # Tiny problems: a single fused XLA dot beats pad/launch overhead.
        use_pallas = not (B <= 128 and input_dim <= 128
                          and hidden <= 128 and n_classes <= 128)
    if not use_pallas:
        x = features.astype(jnp.bfloat16)
        h = jnp.maximum(
            jnp.dot(x, w1, preferred_element_type=jnp.float32) + b1, 0.0)
        return jnp.dot(h.astype(jnp.bfloat16), w2,
                       preferred_element_type=jnp.float32) + b2

    tb = _choose_batch_tile(B)
    b_p = _round_up(B, tb)
    x = features
    if b_p != B:
        # Ragged last tile: pad batch rows only (exact; padded rows sliced away).
        x = jnp.pad(x, ((0, b_p - B), (0, 0)))

    grid = (b_p // tb,)
    flops = 2 * b_p * (input_dim * hidden + hidden * n_classes)
    bytes_accessed = (x.size * x.dtype.itemsize
                      + w1.size * 2 + w2.size * 2
                      + (b1.size + b2.size) * 4
                      + b_p * n_classes * 4)

    out = pl.pallas_call(
        _mlp_kernel,
        out_shape=jax.ShapeDtypeStruct((b_p, n_classes), jnp.float32),
        grid=grid,
        in_specs=[
            # Features: blocked over batch; full-extent (unpadded) feature dim —
            # Mosaic pads the lane layout internally.
            pl.BlockSpec((tb, input_dim), lambda i: (i, 0)),
            # Weights / biases: constant index_map => fetched once, VMEM-resident
            # across the whole grid.  (If weights ever grow to tens of MiB, add
            # pipeline_mode=pl.Buffered(1) and an explicit vmem_limit_bytes.)
            pl.BlockSpec((input_dim, hidden), lambda i: (0, 0)),
            pl.BlockSpec((1, hidden), lambda i: (0, 0)),
            pl.BlockSpec((hidden, n_classes), lambda i: (0, 0)),
            pl.BlockSpec((1, n_classes), lambda i: (0, 0)),
        ],
        # Narrow (n_classes-wide) full-extent output block: masked vst but 16x
        # less HBM writeback than a 128-padded f32 slab (kernel is DMA-bound).
        out_specs=pl.BlockSpec((tb, n_classes), lambda i: (i, 0)),
        compiler_params=pltpu.CompilerParams(
            dimension_semantics=("parallel",)),
        cost_estimate=pl.CostEstimate(
            flops=flops, transcendentals=0, bytes_accessed=bytes_accessed),
    )(x, w1, b1, w2, b2)

    return out[:B]


def _init_linear(key, fan_in, fan_out, dtype=jnp.float32):
    # Mimics nn.Linear default init (uniform +/- 1/sqrt(fan_in)).
    kw, kb = jax.random.split(key)
    bound = 1.0 / (fan_in ** 0.5)
    w = jax.random.uniform(kw, (fan_in, fan_out), dtype, -bound, bound)
    b = jax.random.uniform(kb, (fan_out,), dtype, -bound, bound)
    return w, b


def _reference(features, w1, b1, w2, b2, quantize=True):
    if quantize:
        q = lambda a: a.astype(jnp.bfloat16).astype(jnp.float32)
    else:
        q = lambda a: a
    h = jnp.maximum(q(features) @ q(w1) + b1, 0.0)
    return q(h) @ q(w2) + b2


if __name__ == "__main__":
    input_dim, hidden_dim, number_of_classes = 32, 32, 8
    batch = 8

    key = jax.random.PRNGKey(0)
    k_x, k_x2, k_l1, k_l2 = jax.random.split(key, 4)

    features = jax.random.normal(k_x, (batch, input_dim), jnp.float32)
    w1, b1 = _init_linear(k_l1, input_dim, hidden_dim)
    w2, b2 = _init_linear(k_l2, hidden_dim, number_of_classes)
    params = prepare_params(w1, b1, w2, b2)

    # Force the Pallas path (these tiny shapes would otherwise take the XLA
    # fast path) so the kernel itself is exercised.
    logits = personality_classifier_forward(features, params, use_pallas=True)
    jax.block_until_ready(logits)
    assert logits.shape == (batch, number_of_classes)

    # Tight check vs. a reference using the same bf16 operand quantization.
    ref_q = _reference(features, w1, b1, w2, b2, quantize=True)
    assert jnp.allclose(logits, ref_q, atol=2e-3, rtol=2e-3)
    # Loose check vs. pure-f32 PyTorch-equivalent math.
    ref_f32 = _reference(features, w1, b1, w2, b2, quantize=False)
    assert jnp.allclose(logits, ref_f32, atol=5e-2, rtol=5e-2)

    # Larger, ragged batch exercises multi-tile grid + batch-pad path.
    features2 = jax.random.normal(k_x2, (300, input_dim), jnp.float32)
    logits2 = personality_classifier_forward(features2, params, use_pallas=True)
    jax.block_until_ready(logits2)
    assert logits2.shape == (300, number_of_classes)
    ref2 = _reference(features2, w1, b1, w2, b2, quantize=True)
    assert jnp.allclose(logits2, ref2, atol=2e-3, rtol=2e-3)

    # Auto-selected path (XLA fast path at these sizes) agrees with the kernel.
    logits_fast = personality_classifier_forward(features, params)
    jax.block_until_ready(logits_fast)
    assert jnp.allclose(logits, logits_fast, atol=2e-3, rtol=2e-3)

    print("KERNEL_OK")
</pallas_src>

<mosaic_0001>
module attributes {stable_mosaic.version = 11 : i64} {
  func.func @_mlp_kernel(%arg0: i32, %arg1: memref<16x32xf32, #tpu.memory_space<vmem>>, %arg2: memref<32x32xbf16, #tpu.memory_space<vmem>>, %arg3: memref<1x32xf32, #tpu.memory_space<vmem>>, %arg4: memref<32x8xbf16, #tpu.memory_space<vmem>>, %arg5: memref<1x8xf32, #tpu.memory_space<vmem>>, %arg6: memref<16x8xf32, #tpu.memory_space<vmem>>) attributes {dimension_semantics = [#tpu.dimension_semantics<parallel>], iteration_bounds = array<i64: 1>, scalar_prefetch = 0 : i64, scratch_operands = 0 : i64, tpu.core_type = #tpu.core_type<tc>, window_params = [{transform_indices = @transform_0, window_bounds = array<i64: 16, 32>}, {pipeline_mode = #tpu.pipeline_mode<synchronous>, transform_indices = @transform_1, window_bounds = array<i64: 32, 32>}, {pipeline_mode = #tpu.pipeline_mode<synchronous>, transform_indices = @transform_2, window_bounds = array<i64: 1, 32>}, {pipeline_mode = #tpu.pipeline_mode<synchronous>, transform_indices = @transform_3, window_bounds = array<i64: 32, 8>}, {pipeline_mode = #tpu.pipeline_mode<synchronous>, transform_indices = @transform_4, window_bounds = array<i64: 1, 8>}, {transform_indices = @transform_5, window_bounds = array<i64: 16, 8>}]} {
    %c0 = arith.constant 0 : index
    %c0_0 = arith.constant 0 : index
    %0 = vector.load %arg1[%c0, %c0_0] : memref<16x32xf32, #tpu.memory_space<vmem>>, vector<16x32xf32>
    %1 = arith.truncf %0 : vector<16x32xf32> to vector<16x32xbf16>
    %c0_1 = arith.constant 0 : index
    %c0_2 = arith.constant 0 : index
    %2 = vector.load %arg2[%c0_1, %c0_2] : memref<32x32xbf16, #tpu.memory_space<vmem>>, vector<32x32xbf16>
    %cst = arith.constant dense<0.000000e+00> : vector<16x32xf32>
    %3 = tpu.matmul %1, %2, %cst {dimension_numbers = #tpu.dot_dimension_numbers<[1], [0], [0], [1], [0, 0, 1, 1], [], []>} : vector<16x32xbf16>, vector<32x32xbf16>, vector<16x32xf32> -> vector<16x32xf32>
    %c0_3 = arith.constant 0 : index
    %c0_4 = arith.constant 0 : index
    %4 = vector.load %arg3[%c0_3, %c0_4] : memref<1x32xf32, #tpu.memory_space<vmem>>, vector<1x32xf32>
    %5 = vector.broadcast %4 : vector<1x32xf32> to vector<16x32xf32>
    %6 = arith.addf %3, %5 : vector<16x32xf32>
    %cst_5 = arith.constant 0.000000e+00 : f32
    %7 = vector.broadcast %cst_5 : f32 to vector<16x32xf32>
    %8 = arith.maximumf %6, %7 : vector<16x32xf32>
    %9 = arith.truncf %8 : vector<16x32xf32> to vector<16x32xbf16>
    %c0_6 = arith.constant 0 : index
    %c0_7 = arith.constant 0 : index
    %10 = vector.load %arg4[%c0_6, %c0_7] : memref<32x8xbf16, #tpu.memory_space<vmem>>, vector<32x8xbf16>
    %cst_8 = arith.constant dense<0.000000e+00> : vector<16x8xf32>
    %11 = tpu.matmul %9, %10, %cst_8 {dimension_numbers = #tpu.dot_dimension_numbers<[1], [0], [0], [1], [0, 0, 1, 1], [], []>} : vector<16x32xbf16>, vector<32x8xbf16>, vector<16x8xf32> -> vector<16x8xf32>
    %c0_9 = arith.constant 0 : index
    %c0_10 = arith.constant 0 : index
    %12 = vector.load %arg5[%c0_9, %c0_10] : memref<1x8xf32, #tpu.memory_space<vmem>>, vector<1x8xf32>
    %13 = vector.broadcast %12 : vector<1x8xf32> to vector<16x8xf32>
    %14 = arith.addf %11, %13 : vector<16x8xf32>
    %c0_11 = arith.constant 0 : index
    %c0_12 = arith.constant 0 : index
    %15 = vector.load %arg6[%c0_11, %c0_12] : memref<16x8xf32, #tpu.memory_space<vmem>>, vector<16x8xf32>
    tpu.vector_store %arg6[%c0_11, %c0_12], %14 {strides = array<i32>} : memref<16x8xf32, #tpu.memory_space<vmem>>, vector<16x8xf32>,
    return
  }
  func.func @transform_0(%arg0: i32) -> (i32, i32) {
    %c0_i32 = arith.constant 0 : i32
    %c0_i32_0 = arith.constant 0 : i32
    return %arg0, %c0_i32 : i32, i32
  }
  func.func @transform_1(%arg0: i32) -> (i32, i32) {
    %c0_i32 = arith.constant 0 : i32
    %c0_i32_0 = arith.constant 0 : i32
    %c0_i32_1 = arith.constant 0 : i32
    return %c0_i32, %c0_i32_0 : i32, i32
  }
  func.func @transform_2(%arg0: i32) -> (i32, i32) {
    %c0_i32 = arith.constant 0 : i32
    %c0_i32_0 = arith.constant 0 : i32
    %c0_i32_1 = arith.constant 0 : i32
    return %c0_i32, %c0_i32_0 : i32, i32
  }
  func.func @transform_3(%arg0: i32) -> (i32, i32) {
    %c0_i32 = arith.constant 0 : i32
    %c0_i32_0 = arith.constant 0 : i32
    %c0_i32_1 = arith.constant 0 : i32
    return %c0_i32, %c0_i32_0 : i32, i32
  }
  func.func @transform_4(%arg0: i32) -> (i32, i32) {
    %c0_i32 = arith.constant 0 : i32
    %c0_i32_0 = arith.constant 0 : i32
    %c0_i32_1 = arith.constant 0 : i32
    return %c0_i32, %c0_i32_0 : i32, i32
  }
  func.func @transform_5(%arg0: i32) -> (i32, i32) {
    %c0_i32 = arith.constant 0 : i32
    %c0_i32_0 = arith.constant 0 : i32
    return %arg0, %c0_i32 : i32, i32
  }
}

</mosaic_0001>

<llo_original>
// kernel: tpu_custom_call.1
$region0: #{tpu_custom_call.1}
  #allocation0 [shape = 'u32[]', space=smem, size = 0x4, offset = 0x4, fixed_abs, tag = 'smem constant byte address 0x4 - core index']
  #allocation1 [shape = 'u32[144,128]{1,0:T(1,128)}', space=vmem, size = 0x12000, scoped, tag = 'internal scratch']
  %s0 = inlined_call_operand.vmem [shape: f32[16,32], index: 0, kind: input, shape index: {}]
  %s1 = inlined_call_operand.hbm [shape: bf16[32,32], index: 1, kind: input, shape index: {}]
  %s2 = inlined_call_operand.vmem [shape: f32[1,32], index: 2, kind: input, shape index: {}]
  %s3 = inlined_call_operand.vmem [shape: bf16[32,8], index: 3, kind: input, shape index: {}]
  %s4 = inlined_call_operand.vmem [shape: f32[1,8], index: 4, kind: input, shape index: {}]
  %s5 = inlined_call_operand.vmem [shape: f32[16,8], index: 5, kind: output, shape index: {}]
  %s6 = sld [smem:[#allocation0]]
  $region34: #{tpu_custom_call.1} parent=0
    _
  %s8 = ssub.s32 1, %s6
  %s9 = scalar_select 0, %s8, %s6
  $region1: #{tpu_custom_call.1} parent=0
    #allocation2 [shape = 'u8[8192]{0}', space=vmem, size = 0x2000, scoped, tag = 'input window, operand 1, single buffered']
    #allocation3 [shape = 's32[1]{0}', space=sflag, size = 0x4, scoped, tag = 'scoped memory for tpu_custom_call.1']
    %10 = vsyncpa [#allocation3], 0
    // Predicated region
    $region2: #{tpu_custom_call.1} parent=1 // pred_check
      _
    $region3: #{tpu_custom_call.1} parent=1 // pred_check_branch
      %12 = sbr.rel (0) target = $region5
    $region4: #{tpu_custom_call.1} parent=1 // pred_region
      _
    $region5: #{tpu_custom_call.1} parent=1 // pred_fallthru
      _
    // Predicated region
    $region6: #{tpu_custom_call.1} parent=1 // pred_check
      _
    $region7: #{tpu_custom_call.1} parent=1 // pred_check_branch
      %14 = sbr.rel (0) target = $region9
    $region8: #{tpu_custom_call.1} parent=1 // pred_region
      %s16 = ssub.s32 256, 256
      %17 = vsyncadd [#allocation3], %s16
      %s18 = sshll.u32 [#allocation2], 4
      %s19 = int_to_ptr.vmem [resolvable:$true] %s18
      %24 = dma.hbm_to_vmem [thread:$0]  %s1, 256, %s19, [#allocation3], 64, 64, 4
    $region9: #{tpu_custom_call.1} parent=1 // pred_fallthru
      _
    // Predicated region
    $region10: #{tpu_custom_call.1} parent=1 // pred_check
      _
    $region11: #{tpu_custom_call.1} parent=1 // pred_check_branch
      %26 = sbr.rel (0) target = $region13
    $region12: #{tpu_custom_call.1} parent=1 // pred_region
      _
    $region13: #{tpu_custom_call.1} parent=1 // pred_fallthru
      _
    // Predicated region
    $region14: #{tpu_custom_call.1} parent=1 // pred_check
      _
    $region15: #{tpu_custom_call.1} parent=1 // pred_check_branch
      %28 = sbr.rel (0) target = $region17
    $region16: #{tpu_custom_call.1} parent=1 // pred_region
      _
    $region17: #{tpu_custom_call.1} parent=1 // pred_fallthru
      _
    // Predicated region
    $region18: #{tpu_custom_call.1} parent=1 // pred_check
      _
    $region19: #{tpu_custom_call.1} parent=1 // pred_check_branch
      %30 = sbr.rel (0) target = $region21
    $region20: #{tpu_custom_call.1} parent=1 // pred_region
      _
    $region21: #{tpu_custom_call.1} parent=1 // pred_fallthru
      _
    // Predicated region
    $region22: #{tpu_custom_call.1} parent=1 // pred_check
      _
    $region23: #{tpu_custom_call.1} parent=1 // pred_check_branch
      %32 = sbr.rel (0) target = $region25
    $region24: #{tpu_custom_call.1} parent=1 // pred_region
      %33 = dma.done [#allocation3], 256
    $region25: #{tpu_custom_call.1} parent=1 // pred_fallthru
      _
    %v35 = vld [vmem:[%s0] sm:$0xff]
    %v36 = vld [vmem:[%s0 + $0x8] sm:$0xff]
    %v37 = vpack.c.bf16 %v36, %v35
    %v38 = vld [vmem:[#allocation2] sm:$0xf]
    %v39 = vld [vmem:[#allocation2 + $0x4] sm:$0xf]
    %v40 = vld [vmem:[#allocation2 + $0x8] sm:$0xf]
    %v41 = vld [vmem:[#allocation2 + $0xc] sm:$0xf]
    %v42 = vld [vmem:[%s2] sm:$0x1]
    %v44 = vlaneseq
    %v45 = vshrl.u32 %v44, 7
    %v46 = vsub.s32 0, %v45
    %v47 = vrot.slane %v42, %v46
    %v53 = vunpack.c.l.b16 %v38
    %v54 = vunpack.c.l.b16 %v39
    %v55 = vunpack.c.l.b16 %v40
    %v56 = vunpack.c.l.b16 %v41
    %v57 = vpack.c.b16 %v54, %v53
    %v58 = vpack.c.b16 %v56, %v55
    %vm61 = vcmask 261120
    %v63 = vsel %vm61, %v37, 0
    %65 = vmatprep.subr.bf16.mxu0 0
    %66 = vmatpush1.bf16.msra.mxu0 0
    %67 = vmatprep.subr.bf16.mxu0 0
    %68 = vmatpush1.bf16.msra.mxu0 0
    %69 = vmatprep.subr.bf16.mxu0 0
    %70 = vmatpush1.bf16.msra.mxu0 0
    %71 = vmatprep.subr.bf16.mxu0 0
    %72 = vmatpush1.bf16.msra.mxu0 0
    %73 = vmatprep.subr.bf16.mxu0 0
    %74 = vmatpush1.bf16.msra.mxu0 0
    %75 = vmatprep.subr.bf16.mxu0 0
    %76 = vmatpush1.bf16.msra.mxu0 0
    %77 = vmatprep.subr.bf16.mxu0 0
    %78 = vmatpush1.bf16.msra.mxu0 %v58
    %79 = vmatprep.subr.bf16.mxu0 0
    %80 = vmatpush1.bf16.msra.mxu0 %v57
    %81 = vmatprep.subr.bf16.mxu0 0
    %82 = vmatpush2.bf16.msra.mxu0 0
    %83 = vmatprep.subr.bf16.mxu0 0
    %84 = vmatpush2.bf16.msra.mxu0 0
    %85 = vmatprep.subr.bf16.mxu0 0
    %86 = vmatpush2.bf16.msra.mxu0 0
    %87 = vmatprep.subr.bf16.mxu0 0
    %88 = vmatpush2.bf16.msra.mxu0 0
    %89 = vmatprep.subr.bf16.mxu0 0
    %90 = vmatpush2.bf16.msra.mxu0 0
    %91 = vmatprep.subr.bf16.mxu0 0
    %92 = vmatpush2.bf16.msra.mxu0 0
    %93 = vmatprep.subr.bf16.mxu0 0
    %94 = vmatpush2.bf16.msra.mxu0 0
    %95 = vmatprep.subr.bf16.mxu0 0
    %96 = vmatpush2.bf16.msra.mxu0 0
    %97 = vmatprep.mubr.bf16.mxu0 0
    %98 = vmatmul.mubr.bf16.gmra.mxu0 %v63
    %v99 = vpop.f32.mrf.mxu0
    %v100 = vadd.f32 %v47, %v99
    %v101 = vpop.f32.mrf.mxu0
    %v102 = vpop.f32.mrf.mxu0
    %v103 = vadd.f32 %v47, %v102
    %v104 = vpop.f32.mrf.mxu0
    %105 = vdwg.mxu0
    %v106 = vmax.f32 %v100, 0.0
    %v107 = vmax.f32 %v103, 0.0
    %v108 = vpack.c.bf16 %v107, %v106
    %v109 = vld [vmem:[%s3] sm:$0xf]
    %v110 = vld [vmem:[%s3 + $0x4] sm:$0xf]
    %v111 = vld [vmem:[%s3 + $0x8] sm:$0xf]
    %v112 = vld [vmem:[%s3 + $0xc] sm:$0xf]
    %v113 = vld [vmem:[%s4] sm:$0x1]
    %v115 = vlaneseq
    %v116 = vshrl.u32 %v115, 7
    %v117 = vsub.s32 0, %v116
    %v118 = vrot.slane %v113, %v117
    %v124 = vunpack.c.l.b16 %v109
    %v125 = vunpack.c.l.b16 %v110
    %v126 = vunpack.c.l.b16 %v111
    %v127 = vunpack.c.l.b16 %v112
    %v128 = vpack.c.b16 %v125, %v124
    %v129 = vpack.c.b16 %v127, %v126
    %v133 = vsel %vm61, %v108, 0
    %135 = vmatprep.subr.bf16.mxu0 0
    %136 = vmatpush1.bf16.msra.mxu0 0
    %137 = vmatprep.subr.bf16.mxu0 0
    %138 = vmatpush1.bf16.msra.mxu0 0
    %139 = vmatprep.subr.bf16.mxu0 0
    %140 = vmatpush1.bf16.msra.mxu0 0
    %141 = vmatprep.subr.bf16.mxu0 0
    %142 = vmatpush1.bf16.msra.mxu0 0
    %143 = vmatprep.subr.bf16.mxu0 0
    %144 = vmatpush1.bf16.msra.mxu0 0
    %145 = vmatprep.subr.bf16.mxu0 0
    %146 = vmatpush1.bf16.msra.mxu0 0
    %147 = vmatprep.subr.bf16.mxu0 0
    %148 = vmatpush1.bf16.msra.mxu0 %v129
    %149 = vmatprep.subr.bf16.mxu0 0
    %150 = vmatpush1.bf16.msra.mxu0 %v128
    %151 = vmatprep.subr.bf16.mxu0 0
    %152 = vmatpush2.bf16.msra.mxu0 0
    %153 = vmatprep.subr.bf16.mxu0 0
    %154 = vmatpush2.bf16.msra.mxu0 0
    %155 = vmatprep.subr.bf16.mxu0 0
    %156 = vmatpush2.bf16.msra.mxu0 0
    %157 = vmatprep.subr.bf16.mxu0 0
    %158 = vmatpush2.bf16.msra.mxu0 0
    %159 = vmatprep.subr.bf16.mxu0 0
    %160 = vmatpush2.bf16.msra.mxu0 0
    %161 = vmatprep.subr.bf16.mxu0 0
    %162 = vmatpush2.bf16.msra.mxu0 0
    %163 = vmatprep.subr.bf16.mxu0 0
    %164 = vmatpush2.bf16.msra.mxu0 0
    %165 = vmatprep.subr.bf16.mxu0 0
    %166 = vmatpush2.bf16.msra.mxu0 0
    %167 = vmatprep.mubr.bf16.mxu0 0
    %168 = vmatmul.mubr.bf16.gmra.mxu0 %v133
    %v169 = vpop.f32.mrf.mxu0
    %v170 = vadd.f32 %v118, %v169
    %v171 = vpop.f32.mrf.mxu0
    %v172 = vpop.f32.mrf.mxu0
    %v173 = vadd.f32 %v118, %v172
    %v174 = vpop.f32.mrf.mxu0
    %175 = vdwg.mxu0
    %vm176 = vcmask 64512
    %177 = vst.msk [vmem:[%s5] sm:$0xff] %vm176, %v170
    %178 = vst.msk [vmem:[%s5 + $0x8] sm:$0xff] %vm176, %v173
    // Predicated region
    $region26: #{tpu_custom_call.1} parent=1 // pred_check
      _
    $region27: #{tpu_custom_call.1} parent=1 // pred_check_branch
      %180 = sbr.rel (0) target = $region29
    $region28: #{tpu_custom_call.1} parent=1 // pred_region
      _
    $region29: #{tpu_custom_call.1} parent=1 // pred_fallthru
      _
    // Predicated region
    $region30: #{tpu_custom_call.1} parent=1 // pred_check
      _
    $region31: #{tpu_custom_call.1} parent=1 // pred_check_branch
      %182 = sbr.rel (0) target = $region33
    $region32: #{tpu_custom_call.1} parent=1 // pred_region
      _
    $region33: #{tpu_custom_call.1} parent=1 // pred_fallthru
      _
    %183 = vsyncpa [#allocation3], 1

</llo_original>
